<compile_context>
chip_gen: v7x
topology: tpu7x:2x2x1
jax: 0.10.0
libtpu: 0.0.40
codegen_flags: <defaults>
</compile_context>

<pallas_src>
import functools

import jax
import jax.numpy as jnp
from jax import lax
from jax.experimental import pallas as pl
from jax.experimental.pallas import tpu as pltpu

EPS = 1e-5


def resblock_kernel(x_ref, w1_ref, w2_ref, masks_ref, out_ref, *, H, W, C):
    HW = H * W
    x = x_ref[0]            # (C, HW) f32, lane-dense residual/input
    masks = masks_ref[...]  # (9, HW) f32, 0/1 validity of each tap per position

    def conv3x3(inp, w_all):
        # Channel mixing for all 9 taps in one MXU matmul:
        #   y[t*C + co, p] = sum_ci w[co, ci, t] * inp[ci, p]
        y = jnp.dot(w_all, inp, preferred_element_type=jnp.float32)  # (9C, HW)
        acc = jnp.zeros((C, HW), jnp.float32)
        for t in range(9):
            dh, dw = t // 3 - 1, t % 3 - 1
            shift = dh * W + dw               # neighbour offset in flattened HW
            yt = y[t * C:(t + 1) * C, :]      # (C, HW) contribution of tap t
            if shift != 0:
                # yt[:, p] <- y_t[:, p + shift] (XLU lane rotation), then zero
                # the taps that fall outside the image (zero padding).
                yt = pltpu.roll(yt, (-shift) % HW, axis=1)
                yt = yt * masks[t:t + 1, :]
            acc = acc + yt
        return acc

    def inorm(y):
        # InstanceNorm2d: per-channel biased variance over the spatial (lane) axis.
        mean = jnp.mean(y, axis=1, keepdims=True)
        var = jnp.mean(jnp.square(y - mean), axis=1, keepdims=True)
        return (y - mean) * lax.rsqrt(var + EPS)

    h1 = jnp.maximum(inorm(conv3x3(x, w1_ref[...])), 0.0)
    h2 = inorm(conv3x3(h1, w2_ref[...]))
    out_ref[0] = jnp.maximum(h2 + x, 0.0).astype(out_ref.dtype)


def resblock_forward(x_nchw, w1_torch, w2_torch):
    """x_nchw: (N, C, H, W); weights in PyTorch layout (C, C, 3, 3)."""
    N, C, H, W = x_nchw.shape
    HW = H * W

    # Lane-dense activations: (N, C, H*W) -- a free reshape, no HBM shuffle.
    x = x_nchw.reshape(N, C, HW).astype(jnp.float32)

    # Weights packed as (9*C_out, C_in): row (kh*3 + kw)*C + co, column ci.
    def pack(w):
        return jnp.transpose(w, (2, 3, 0, 1)).reshape(9 * C, C).astype(jnp.float32)

    w1 = pack(w1_torch)
    w2 = pack(w2_torch)

    # 0/1 validity masks of the 9 taps per flattened spatial position (zero pad).
    r = jnp.arange(HW, dtype=jnp.int32) // W
    c = jnp.arange(HW, dtype=jnp.int32) % W
    masks = jnp.stack(
        [((r + dh >= 0) & (r + dh < H) & (c + dw >= 0) & (c + dw < W))
         for dh in (-1, 0, 1) for dw in (-1, 0, 1)],
        axis=0).astype(jnp.float32)                                   # (9, HW)

    kernel = functools.partial(resblock_kernel, H=H, W=W, C=C)
    out = pl.pallas_call(
        kernel,
        out_shape=jax.ShapeDtypeStruct((N, C, HW), jnp.float32),
        grid_spec=pltpu.PrefetchScalarGridSpec(
            num_scalar_prefetch=0,
            grid=(N,),
            in_specs=[
                pl.BlockSpec((1, C, HW), lambda n: (n, 0, 0)),    # activations
                pl.BlockSpec((9 * C, C), lambda n: (0, 0)),       # conv1 weights
                pl.BlockSpec((9 * C, C), lambda n: (0, 0)),       # conv2 weights
                pl.BlockSpec((9, HW), lambda n: (0, 0)),          # halo masks
            ],
            out_specs=pl.BlockSpec((1, C, HW), lambda n: (n, 0, 0)),
        ),
        compiler_params=pltpu.CompilerParams(
            dimension_semantics=("parallel",)),
    )(x, w1, w2, masks)
    return out.reshape(N, C, H, W)


def resblock_reference(x_nchw, w1_torch, w2_torch):
    """Pure-JAX reference matching the PyTorch forward (NCHW throughout)."""
    x = x_nchw.astype(jnp.float32)
    dn = lax.conv_dimension_numbers(x.shape, w1_torch.shape,
                                    ("NCHW", "OIHW", "NCHW"))

    def inorm(y):
        mean = jnp.mean(y, axis=(2, 3), keepdims=True)
        var = jnp.mean((y - mean) ** 2, axis=(2, 3), keepdims=True)
        return (y - mean) * lax.rsqrt(var + EPS)

    h = lax.conv_general_dilated(x, w1_torch.astype(jnp.float32), (1, 1), "SAME",
                                 dimension_numbers=dn)
    h = jnp.maximum(inorm(h), 0.0)
    h = lax.conv_general_dilated(h, w2_torch.astype(jnp.float32), (1, 1), "SAME",
                                 dimension_numbers=dn)
    return jnp.maximum(inorm(h) + x, 0.0)


if __name__ == "__main__":
    N, C, H, W = 2, 4, 16, 16
    key = jax.random.PRNGKey(0)
    kx, k1, k2 = jax.random.split(key, 3)

    x = jax.random.normal(kx, (N, C, H, W), dtype=jnp.float32)
    # Deterministic conv weights, PyTorch layout (cout, cin, kh, kw), kaiming-ish scale.
    scale = 1.0 / jnp.sqrt(jnp.float32(C * 9))
    w1 = jax.random.normal(k1, (C, C, 3, 3), dtype=jnp.float32) * scale
    w2 = jax.random.normal(k2, (C, C, 3, 3), dtype=jnp.float32) * scale

    out = jax.block_until_ready(resblock_forward(x, w1, w2))
    ref = jax.block_until_ready(resblock_reference(x, w1, w2))

    assert out.shape == (N, C, H, W), out.shape
    err = float(jnp.max(jnp.abs(out - ref)))
    assert jnp.allclose(out, ref, atol=1e-4, rtol=1e-4), err
    print("KERNEL_OK")
</pallas_src>

<mosaic_0001>
module attributes {stable_mosaic.version = 11 : i64} {
  func.func @resblock_kernel(%arg0: i32, %arg1: memref<1x4x256xf32, #tpu.memory_space<vmem>>, %arg2: memref<36x4xf32, #tpu.memory_space<vmem>>, %arg3: memref<36x4xf32, #tpu.memory_space<vmem>>, %arg4: memref<9x256xf32, #tpu.memory_space<vmem>>, %arg5: memref<1x4x256xf32, #tpu.memory_space<vmem>>) attributes {dimension_semantics = [#tpu.dimension_semantics<parallel>], iteration_bounds = array<i64: 2>, scalar_prefetch = 0 : i64, scratch_operands = 0 : i64, tpu.core_type = #tpu.core_type<tc>, window_params = [{transform_indices = @transform_0, window_bounds = array<i64: 1, 4, 256>}, {pipeline_mode = #tpu.pipeline_mode<synchronous>, transform_indices = @transform_1, window_bounds = array<i64: 36, 4>}, {pipeline_mode = #tpu.pipeline_mode<synchronous>, transform_indices = @transform_2, window_bounds = array<i64: 36, 4>}, {pipeline_mode = #tpu.pipeline_mode<synchronous>, transform_indices = @transform_3, window_bounds = array<i64: 9, 256>}, {transform_indices = @transform_4, window_bounds = array<i64: 1, 4, 256>}]} {
    %c0 = arith.constant 0 : index
    %c0_0 = arith.constant 0 : index
    %c0_1 = arith.constant 0 : index
    %0 = vector.load %arg1[%c0, %c0_0, %c0_1] : memref<1x4x256xf32, #tpu.memory_space<vmem>>, vector<1x4x256xf32>
    %1 = vector.shape_cast %0 : vector<1x4x256xf32> to vector<4x256xf32>
    %c0_2 = arith.constant 0 : index
    %c0_3 = arith.constant 0 : index
    %2 = vector.load %arg4[%c0_2, %c0_3] : memref<9x256xf32, #tpu.memory_space<vmem>>, vector<9x256xf32>
    %c0_4 = arith.constant 0 : index
    %c0_5 = arith.constant 0 : index
    %3 = vector.load %arg2[%c0_4, %c0_5] : memref<36x4xf32, #tpu.memory_space<vmem>>, vector<36x4xf32>
    %cst = arith.constant dense<0.000000e+00> : vector<36x256xf32>
    %4 = tpu.matmul %3, %1, %cst {dimension_numbers = #tpu.dot_dimension_numbers<[1], [0], [0], [1], [0, 0, 1, 1], [], []>} : vector<36x4xf32>, vector<4x256xf32>, vector<36x256xf32> -> vector<36x256xf32>
    %cst_6 = arith.constant 0.000000e+00 : f32
    %5 = vector.broadcast %cst_6 : f32 to vector<4x256xf32>
    %6 = vector.extract_strided_slice %4 {offsets = [0, 0], sizes = [4, 256], strides = [1, 1]} : vector<36x256xf32> to vector<4x256xf32>
    %c17_i32 = arith.constant 17 : i32
    %7 = tpu.dynamic_rotate %6 by %c17_i32 dim 1 : vector<4x256xf32>, i32 -> vector<4x256xf32>
    %8 = vector.extract_strided_slice %2 {offsets = [0, 0], sizes = [1, 256], strides = [1, 1]} : vector<9x256xf32> to vector<1x256xf32>
    %9 = vector.broadcast %8 : vector<1x256xf32> to vector<4x256xf32>
    %10 = arith.mulf %7, %9 : vector<4x256xf32>
    %11 = arith.addf %5, %10 : vector<4x256xf32>
    %12 = vector.extract_strided_slice %4 {offsets = [4, 0], sizes = [4, 256], strides = [1, 1]} : vector<36x256xf32> to vector<4x256xf32>
    %c16_i32 = arith.constant 16 : i32
    %13 = tpu.dynamic_rotate %12 by %c16_i32 dim 1 : vector<4x256xf32>, i32 -> vector<4x256xf32>
    %14 = vector.extract_strided_slice %2 {offsets = [1, 0], sizes = [1, 256], strides = [1, 1]} : vector<9x256xf32> to vector<1x256xf32>
    %15 = vector.broadcast %14 : vector<1x256xf32> to vector<4x256xf32>
    %16 = arith.mulf %13, %15 : vector<4x256xf32>
    %17 = arith.addf %11, %16 : vector<4x256xf32>
    %18 = vector.extract_strided_slice %4 {offsets = [8, 0], sizes = [4, 256], strides = [1, 1]} : vector<36x256xf32> to vector<4x256xf32>
    %c15_i32 = arith.constant 15 : i32
    %19 = tpu.dynamic_rotate %18 by %c15_i32 dim 1 : vector<4x256xf32>, i32 -> vector<4x256xf32>
    %20 = vector.extract_strided_slice %2 {offsets = [2, 0], sizes = [1, 256], strides = [1, 1]} : vector<9x256xf32> to vector<1x256xf32>
    %21 = vector.broadcast %20 : vector<1x256xf32> to vector<4x256xf32>
    %22 = arith.mulf %19, %21 : vector<4x256xf32>
    %23 = arith.addf %17, %22 : vector<4x256xf32>
    %24 = vector.extract_strided_slice %4 {offsets = [12, 0], sizes = [4, 256], strides = [1, 1]} : vector<36x256xf32> to vector<4x256xf32>
    %c1_i32 = arith.constant 1 : i32
    %25 = tpu.dynamic_rotate %24 by %c1_i32 dim 1 : vector<4x256xf32>, i32 -> vector<4x256xf32>
    %26 = vector.extract_strided_slice %2 {offsets = [3, 0], sizes = [1, 256], strides = [1, 1]} : vector<9x256xf32> to vector<1x256xf32>
    %27 = vector.broadcast %26 : vector<1x256xf32> to vector<4x256xf32>
    %28 = arith.mulf %25, %27 : vector<4x256xf32>
    %29 = arith.addf %23, %28 : vector<4x256xf32>
    %30 = vector.extract_strided_slice %4 {offsets = [16, 0], sizes = [4, 256], strides = [1, 1]} : vector<36x256xf32> to vector<4x256xf32>
    %31 = arith.addf %29, %30 : vector<4x256xf32>
    %32 = vector.extract_strided_slice %4 {offsets = [20, 0], sizes = [4, 256], strides = [1, 1]} : vector<36x256xf32> to vector<4x256xf32>
    %c255_i32 = arith.constant 255 : i32
    %33 = tpu.dynamic_rotate %32 by %c255_i32 dim 1 : vector<4x256xf32>, i32 -> vector<4x256xf32>
    %34 = vector.extract_strided_slice %2 {offsets = [5, 0], sizes = [1, 256], strides = [1, 1]} : vector<9x256xf32> to vector<1x256xf32>
    %35 = vector.broadcast %34 : vector<1x256xf32> to vector<4x256xf32>
    %36 = arith.mulf %33, %35 : vector<4x256xf32>
    %37 = arith.addf %31, %36 : vector<4x256xf32>
    %38 = vector.extract_strided_slice %4 {offsets = [24, 0], sizes = [4, 256], strides = [1, 1]} : vector<36x256xf32> to vector<4x256xf32>
    %c241_i32 = arith.constant 241 : i32
    %39 = tpu.dynamic_rotate %38 by %c241_i32 dim 1 : vector<4x256xf32>, i32 -> vector<4x256xf32>
    %40 = vector.extract_strided_slice %2 {offsets = [6, 0], sizes = [1, 256], strides = [1, 1]} : vector<9x256xf32> to vector<1x256xf32>
    %41 = vector.broadcast %40 : vector<1x256xf32> to vector<4x256xf32>
    %42 = arith.mulf %39, %41 : vector<4x256xf32>
    %43 = arith.addf %37, %42 : vector<4x256xf32>
    %44 = vector.extract_strided_slice %4 {offsets = [28, 0], sizes = [4, 256], strides = [1, 1]} : vector<36x256xf32> to vector<4x256xf32>
    %c240_i32 = arith.constant 240 : i32
    %45 = tpu.dynamic_rotate %44 by %c240_i32 dim 1 : vector<4x256xf32>, i32 -> vector<4x256xf32>
    %46 = vector.extract_strided_slice %2 {offsets = [7, 0], sizes = [1, 256], strides = [1, 1]} : vector<9x256xf32> to vector<1x256xf32>
    %47 = vector.broadcast %46 : vector<1x256xf32> to vector<4x256xf32>
    %48 = arith.mulf %45, %47 : vector<4x256xf32>
    %49 = arith.addf %43, %48 : vector<4x256xf32>
    %50 = vector.extract_strided_slice %4 {offsets = [32, 0], sizes = [4, 256], strides = [1, 1]} : vector<36x256xf32> to vector<4x256xf32>
    %c239_i32 = arith.constant 239 : i32
    %51 = tpu.dynamic_rotate %50 by %c239_i32 dim 1 : vector<4x256xf32>, i32 -> vector<4x256xf32>
    %52 = vector.extract_strided_slice %2 {offsets = [8, 0], sizes = [1, 256], strides = [1, 1]} : vector<9x256xf32> to vector<1x256xf32>
    %53 = vector.broadcast %52 : vector<1x256xf32> to vector<4x256xf32>
    %54 = arith.mulf %51, %53 : vector<4x256xf32>
    %55 = arith.addf %49, %54 : vector<4x256xf32>
    %cst_7 = arith.constant dense<0.000000e+00> : vector<4xf32>
    %56 = vector.multi_reduction <add>, %55, %cst_7 [1] : vector<4x256xf32> to vector<4xf32>
    %57 = vector.shape_cast %56 : vector<4xf32> to vector<4x1xf32>
    %cst_8 = arith.constant 2.560000e+02 : f32
    %58 = vector.broadcast %cst_8 : f32 to vector<4x1xf32>
    %59 = arith.divf %57, %58 : vector<4x1xf32>
    %60 = vector.broadcast %59 : vector<4x1xf32> to vector<4x256xf32>
    %61 = arith.subf %55, %60 : vector<4x256xf32>
    %62 = arith.mulf %61, %61 : vector<4x256xf32>
    %cst_9 = arith.constant dense<0.000000e+00> : vector<4xf32>
    %63 = vector.multi_reduction <add>, %62, %cst_9 [1] : vector<4x256xf32> to vector<4xf32>
    %64 = vector.shape_cast %63 : vector<4xf32> to vector<4x1xf32>
    %cst_10 = arith.constant 2.560000e+02 : f32
    %65 = vector.broadcast %cst_10 : f32 to vector<4x1xf32>
    %66 = arith.divf %64, %65 : vector<4x1xf32>
    %67 = vector.broadcast %59 : vector<4x1xf32> to vector<4x256xf32>
    %68 = arith.subf %55, %67 : vector<4x256xf32>
    %cst_11 = arith.constant 9.99999974E-6 : f32
    %69 = vector.broadcast %cst_11 : f32 to vector<4x1xf32>
    %70 = arith.addf %66, %69 : vector<4x1xf32>
    %71 = math.rsqrt %70 : vector<4x1xf32>
    %72 = vector.broadcast %71 : vector<4x1xf32> to vector<4x256xf32>
    %73 = arith.mulf %68, %72 : vector<4x256xf32>
    %cst_12 = arith.constant 0.000000e+00 : f32
    %74 = vector.broadcast %cst_12 : f32 to vector<4x256xf32>
    %75 = arith.maximumf %73, %74 : vector<4x256xf32>
    %c0_13 = arith.constant 0 : index
    %c0_14 = arith.constant 0 : index
    %76 = vector.load %arg3[%c0_13, %c0_14] : memref<36x4xf32, #tpu.memory_space<vmem>>, vector<36x4xf32>
    %cst_15 = arith.constant dense<0.000000e+00> : vector<36x256xf32>
    %77 = tpu.matmul %76, %75, %cst_15 {dimension_numbers = #tpu.dot_dimension_numbers<[1], [0], [0], [1], [0, 0, 1, 1], [], []>} : vector<36x4xf32>, vector<4x256xf32>, vector<36x256xf32> -> vector<36x256xf32>
    %cst_16 = arith.constant 0.000000e+00 : f32
    %78 = vector.broadcast %cst_16 : f32 to vector<4x256xf32>
    %79 = vector.extract_strided_slice %77 {offsets = [0, 0], sizes = [4, 256], strides = [1, 1]} : vector<36x256xf32> to vector<4x256xf32>
    %c17_i32_17 = arith.constant 17 : i32
    %80 = tpu.dynamic_rotate %79 by %c17_i32_17 dim 1 : vector<4x256xf32>, i32 -> vector<4x256xf32>
    %81 = vector.extract_strided_slice %2 {offsets = [0, 0], sizes = [1, 256], strides = [1, 1]} : vector<9x256xf32> to vector<1x256xf32>
    %82 = vector.broadcast %81 : vector<1x256xf32> to vector<4x256xf32>
    %83 = arith.mulf %80, %82 : vector<4x256xf32>
    %84 = arith.addf %78, %83 : vector<4x256xf32>
    %85 = vector.extract_strided_slice %77 {offsets = [4, 0], sizes = [4, 256], strides = [1, 1]} : vector<36x256xf32> to vector<4x256xf32>
    %c16_i32_18 = arith.constant 16 : i32
    %86 = tpu.dynamic_rotate %85 by %c16_i32_18 dim 1 : vector<4x256xf32>, i32 -> vector<4x256xf32>
    %87 = vector.extract_strided_slice %2 {offsets = [1, 0], sizes = [1, 256], strides = [1, 1]} : vector<9x256xf32> to vector<1x256xf32>
    %88 = vector.broadcast %87 : vector<1x256xf32> to vector<4x256xf32>
    %89 = arith.mulf %86, %88 : vector<4x256xf32>
    %90 = arith.addf %84, %89 : vector<4x256xf32>
    %91 = vector.extract_strided_slice %77 {offsets = [8, 0], sizes = [4, 256], strides = [1, 1]} : vector<36x256xf32> to vector<4x256xf32>
    %c15_i32_19 = arith.constant 15 : i32
    %92 = tpu.dynamic_rotate %91 by %c15_i32_19 dim 1 : vector<4x256xf32>, i32 -> vector<4x256xf32>
    %93 = vector.extract_strided_slice %2 {offsets = [2, 0], sizes = [1, 256], strides = [1, 1]} : vector<9x256xf32> to vector<1x256xf32>
    %94 = vector.broadcast %93 : vector<1x256xf32> to vector<4x256xf32>
    %95 = arith.mulf %92, %94 : vector<4x256xf32>
    %96 = arith.addf %90, %95 : vector<4x256xf32>
    %97 = vector.extract_strided_slice %77 {offsets = [12, 0], sizes = [4, 256], strides = [1, 1]} : vector<36x256xf32> to vector<4x256xf32>
    %c1_i32_20 = arith.constant 1 : i32
    %98 = tpu.dynamic_rotate %97 by %c1_i32_20 dim 1 : vector<4x256xf32>, i32 -> vector<4x256xf32>
    %99 = vector.extract_strided_slice %2 {offsets = [3, 0], sizes = [1, 256], strides = [1, 1]} : vector<9x256xf32> to vector<1x256xf32>
    %100 = vector.broadcast %99 : vector<1x256xf32> to vector<4x256xf32>
    %101 = arith.mulf %98, %100 : vector<4x256xf32>
    %102 = arith.addf %96, %101 : vector<4x256xf32>
    %103 = vector.extract_strided_slice %77 {offsets = [16, 0], sizes = [4, 256], strides = [1, 1]} : vector<36x256xf32> to vector<4x256xf32>
    %104 = arith.addf %102, %103 : vector<4x256xf32>
    %105 = vector.extract_strided_slice %77 {offsets = [20, 0], sizes = [4, 256], strides = [1, 1]} : vector<36x256xf32> to vector<4x256xf32>
    %c255_i32_21 = arith.constant 255 : i32
    %106 = tpu.dynamic_rotate %105 by %c255_i32_21 dim 1 : vector<4x256xf32>, i32 -> vector<4x256xf32>
    %107 = vector.extract_strided_slice %2 {offsets = [5, 0], sizes = [1, 256], strides = [1, 1]} : vector<9x256xf32> to vector<1x256xf32>
    %108 = vector.broadcast %107 : vector<1x256xf32> to vector<4x256xf32>
    %109 = arith.mulf %106, %108 : vector<4x256xf32>
    %110 = arith.addf %104, %109 : vector<4x256xf32>
    %111 = vector.extract_strided_slice %77 {offsets = [24, 0], sizes = [4, 256], strides = [1, 1]} : vector<36x256xf32> to vector<4x256xf32>
    %c241_i32_22 = arith.constant 241 : i32
    %112 = tpu.dynamic_rotate %111 by %c241_i32_22 dim 1 : vector<4x256xf32>, i32 -> vector<4x256xf32>
    %113 = vector.extract_strided_slice %2 {offsets = [6, 0], sizes = [1, 256], strides = [1, 1]} : vector<9x256xf32> to vector<1x256xf32>
    %114 = vector.broadcast %113 : vector<1x256xf32> to vector<4x256xf32>
    %115 = arith.mulf %112, %114 : vector<4x256xf32>
    %116 = arith.addf %110, %115 : vector<4x256xf32>
    %117 = vector.extract_strided_slice %77 {offsets = [28, 0], sizes = [4, 256], strides = [1, 1]} : vector<36x256xf32> to vector<4x256xf32>
    %c240_i32_23 = arith.constant 240 : i32
    %118 = tpu.dynamic_rotate %117 by %c240_i32_23 dim 1 : vector<4x256xf32>, i32 -> vector<4x256xf32>
    %119 = vector.extract_strided_slice %2 {offsets = [7, 0], sizes = [1, 256], strides = [1, 1]} : vector<9x256xf32> to vector<1x256xf32>
    %120 = vector.broadcast %119 : vector<1x256xf32> to vector<4x256xf32>
    %121 = arith.mulf %118, %120 : vector<4x256xf32>
    %122 = arith.addf %116, %121 : vector<4x256xf32>
    %123 = vector.extract_strided_slice %77 {offsets = [32, 0], sizes = [4, 256], strides = [1, 1]} : vector<36x256xf32> to vector<4x256xf32>
    %c239_i32_24 = arith.constant 239 : i32
    %124 = tpu.dynamic_rotate %123 by %c239_i32_24 dim 1 : vector<4x256xf32>, i32 -> vector<4x256xf32>
    %125 = vector.extract_strided_slice %2 {offsets = [8, 0], sizes = [1, 256], strides = [1, 1]} : vector<9x256xf32> to vector<1x256xf32>
    %126 = vector.broadcast %125 : vector<1x256xf32> to vector<4x256xf32>
    %127 = arith.mulf %124, %126 : vector<4x256xf32>
    %128 = arith.addf %122, %127 : vector<4x256xf32>
    %cst_25 = arith.constant dense<0.000000e+00> : vector<4xf32>
    %129 = vector.multi_reduction <add>, %128, %cst_25 [1] : vector<4x256xf32> to vector<4xf32>
    %130 = vector.shape_cast %129 : vector<4xf32> to vector<4x1xf32>
    %cst_26 = arith.constant 2.560000e+02 : f32
    %131 = vector.broadcast %cst_26 : f32 to vector<4x1xf32>
    %132 = arith.divf %130, %131 : vector<4x1xf32>
    %133 = vector.broadcast %132 : vector<4x1xf32> to vector<4x256xf32>
    %134 = arith.subf %128, %133 : vector<4x256xf32>
    %135 = arith.mulf %134, %134 : vector<4x256xf32>
    %cst_27 = arith.constant dense<0.000000e+00> : vector<4xf32>
    %136 = vector.multi_reduction <add>, %135, %cst_27 [1] : vector<4x256xf32> to vector<4xf32>
    %137 = vector.shape_cast %136 : vector<4xf32> to vector<4x1xf32>
    %cst_28 = arith.constant 2.560000e+02 : f32
    %138 = vector.broadcast %cst_28 : f32 to vector<4x1xf32>
    %139 = arith.divf %137, %138 : vector<4x1xf32>
    %140 = vector.broadcast %132 : vector<4x1xf32> to vector<4x256xf32>
    %141 = arith.subf %128, %140 : vector<4x256xf32>
    %cst_29 = arith.constant 9.99999974E-6 : f32
    %142 = vector.broadcast %cst_29 : f32 to vector<4x1xf32>
    %143 = arith.addf %139, %142 : vector<4x1xf32>
    %144 = math.rsqrt %143 : vector<4x1xf32>
    %145 = vector.broadcast %144 : vector<4x1xf32> to vector<4x256xf32>
    %146 = arith.mulf %141, %145 : vector<4x256xf32>
    %147 = arith.addf %146, %1 : vector<4x256xf32>
    %cst_30 = arith.constant 0.000000e+00 : f32
    %148 = vector.broadcast %cst_30 : f32 to vector<4x256xf32>
    %149 = arith.maximumf %147, %148 : vector<4x256xf32>
    %c0_31 = arith.constant 0 : index
    %c0_32 = arith.constant 0 : index
    %c0_33 = arith.constant 0 : index
    %150 = vector.load %arg5[%c0_31, %c0_32, %c0_33] : memref<1x4x256xf32, #tpu.memory_space<vmem>>, vector<1x4x256xf32>
    %151 = vector.shape_cast %150 : vector<1x4x256xf32> to vector<4x256xf32>
    %152 = vector.shape_cast %149 : vector<4x256xf32> to vector<1x4x256xf32>
    tpu.vector_store %arg5[%c0_31, %c0_32, %c0_33], %152 {strides = array<i32>} : memref<1x4x256xf32, #tpu.memory_space<vmem>>, vector<1x4x256xf32>,
    return
  }
  func.func @transform_0(%arg0: i32) -> (i32, i32, i32) {
    %c0_i32 = arith.constant 0 : i32
    %c0_i32_0 = arith.constant 0 : i32
    %c0_i32_1 = arith.constant 0 : i32
    return %arg0, %c0_i32, %c0_i32_0 : i32, i32, i32
  }
  func.func @transform_1(%arg0: i32) -> (i32, i32) {
    %c0_i32 = arith.constant 0 : i32
    %c0_i32_0 = arith.constant 0 : i32
    %c0_i32_1 = arith.constant 0 : i32
    return %c0_i32, %c0_i32_0 : i32, i32
  }
  func.func @transform_2(%arg0: i32) -> (i32, i32) {
    %c0_i32 = arith.constant 0 : i32
    %c0_i32_0 = arith.constant 0 : i32
    %c0_i32_1 = arith.constant 0 : i32
    return %c0_i32, %c0_i32_0 : i32, i32
  }
  func.func @transform_3(%arg0: i32) -> (i32, i32) {
    %c0_i32 = arith.constant 0 : i32
    %c0_i32_0 = arith.constant 0 : i32
    %c0_i32_1 = arith.constant 0 : i32
    return %c0_i32, %c0_i32_0 : i32, i32
  }
  func.func @transform_4(%arg0: i32) -> (i32, i32, i32) {
    %c0_i32 = arith.constant 0 : i32
    %c0_i32_0 = arith.constant 0 : i32
    %c0_i32_1 = arith.constant 0 : i32
    return %arg0, %c0_i32, %c0_i32_0 : i32, i32, i32
  }
}

</mosaic_0001>

<llo_original>
// kernel: tpu_custom_call.1
$region0: #{tpu_custom_call.1}
  #allocation0 [shape = 'u32[]', space=smem, size = 0x4, offset = 0x4, fixed_abs, tag = 'smem constant byte address 0x4 - core index']
  #allocation1 [shape = 'u32[144,128]{1,0:T(1,128)}', space=vmem, size = 0x12000, scoped, tag = 'internal scratch']
  %s0 = inlined_call_operand.vmem [shape: f32[2,4,256], index: 0, kind: input, shape index: {}]
  %s1 = inlined_call_operand.vmem [shape: f32[36,4], index: 1, kind: input, shape index: {}]
  %s2 = inlined_call_operand.vmem [shape: f32[36,4], index: 2, kind: input, shape index: {}]
  %s3 = inlined_call_operand.vmem [shape: f32[9,256], index: 3, kind: input, shape index: {}]
  %s4 = inlined_call_operand.hbm [shape: f32[2,4,256], index: 4, kind: output, shape index: {}]
  %s5 = sld [smem:[#allocation0]]
  $region49: #{tpu_custom_call.1} parent=0
    _
  %s7 = ssub.s32 1, %s5
  %s8 = scalar_select 0, %s7, %s5
  $region1: #{tpu_custom_call.1} parent=0
    #allocation2 [shape = 'u8[8192]{0}', space=vmem, size = 0x2000, scoped, tag = 'output window, operand 0']
    #allocation3 [shape = 's32[2]{0}', space=sflag, size = 0x8, scoped, tag = 'scoped memory for tpu_custom_call.1']
    %9 = vsyncpa [#allocation3], 0
    %s10 = scalar_lea.sflag [#allocation3], 1
    %11 = vsyncpa %s10, 0
    loop: start=0, step=1, limit=4
    $region2: #{tpu_custom_call.1} parent=1 // loop_pre_header
      _
    $region3: #{tpu_custom_call.1} parent=1 // loop_header
      %s13 = sphi 0, %s17
      %p14 = scmp.ge.s32.totalorder %s13, 4
      %s23 = sphi 0, %s25
      %s26 = sphi 0, %s23
      %s27 = sphi 0, %s26
      %s43 = sphi 0, %s27
      %s47 = sphi 0, %s47
      %s49 = sphi 0, %s47
      %s50 = sphi 0, %s49
      %s64 = sphi 0, %s50
      %s68 = sphi 0, %s68
      %s70 = sphi 0, %s68
      %s71 = sphi 0, %s70
      %s85 = sphi 0, %s71
      %s89 = sphi 0, %s89
      %s91 = sphi 0, %s89
      %s92 = sphi 0, %s91
      %s106 = sphi 0, %s92
      %s112 = sphi 0, %s114
      %s115 = sphi 0, %s112
      %s116 = sphi 0, %s115
      %s132 = sphi 0, %s116
    $region4: #{tpu_custom_call.1} parent=1 // loop_header_branch
      %16 = sbr.rel (%p14) target = $region8
    $region5: #{tpu_custom_call.1} parent=1 // loop_body
      %s18 = ssub.s32 %s13, 1
      %s19 = ssub.s32 %s13, 2
      %s20 = sadd.s32 %s13, 1
      %s21 = ssub.s32 %s13, %s20
      %p22 = scmp.eq.s32.totalorder %s21, 0
      %s24 = sadd.s32 %s23, 1
      %s25 = scalar_select %p22, %s23, %s24
      %p28 = pneg %p22
      %p29 = scmp.eq.s32.totalorder %s13, 1
      %p30 = por %p28, %p29
      %p31 = scmp.ne.s32.totalorder %s23, %s26
      %p32 = scmp.eq.s32.totalorder %s13, 0
      %p33 = por %p31, %p32
      %p34 = scmp.ne.s32.totalorder %s23, %s26
      %p35 = scmp.eq.s32.totalorder %s18, 1
      %p36 = por %p34, %p35
      %p37 = scmp.ne.s32.totalorder %s26, %s27
      %p38 = scmp.eq.s32.totalorder %s18, 0
      %p39 = por %p37, %p38
      %p40 = scmp.ne.s32.totalorder %s26, %s27
      %p41 = scmp.eq.s32.totalorder %s19, 1
      %p42 = por %p40, %p41
      %p44 = scmp.ne.s32.totalorder %s27, %s43
      %p45 = scmp.eq.s32.totalorder %s19, 0
      %p46 = por %p44, %p45
      %s48 = sadd.s32 %s47, 1
      %p51 = scmp.eq.s32.totalorder %s13, 1
      %p52 = scmp.ne.s32.totalorder %s47, %s49
      %p53 = scmp.eq.s32.totalorder %s13, 0
      %p54 = por %p52, %p53
      %p55 = scmp.ne.s32.totalorder %s47, %s49
      %p56 = scmp.eq.s32.totalorder %s18, 1
      %p57 = por %p55, %p56
      %p58 = scmp.ne.s32.totalorder %s49, %s50
      %p59 = scmp.eq.s32.totalorder %s18, 0
      %p60 = por %p58, %p59
      %p61 = scmp.ne.s32.totalorder %s49, %s50
      %p62 = scmp.eq.s32.totalorder %s19, 1
      %p63 = por %p61, %p62
      %p65 = scmp.ne.s32.totalorder %s50, %s64
      %p66 = scmp.eq.s32.totalorder %s19, 0
      %p67 = por %p65, %p66
      %s69 = sadd.s32 %s68, 1
      %p72 = scmp.eq.s32.totalorder %s13, 1
      %p73 = scmp.ne.s32.totalorder %s68, %s70
      %p74 = scmp.eq.s32.totalorder %s13, 0
      %p75 = por %p73, %p74
      %p76 = scmp.ne.s32.totalorder %s68, %s70
      %p77 = scmp.eq.s32.totalorder %s18, 1
      %p78 = por %p76, %p77
      %p79 = scmp.ne.s32.totalorder %s70, %s71
      %p80 = scmp.eq.s32.totalorder %s18, 0
      %p81 = por %p79, %p80
      %p82 = scmp.ne.s32.totalorder %s70, %s71
      %p83 = scmp.eq.s32.totalorder %s19, 1
      %p84 = por %p82, %p83
      %p86 = scmp.ne.s32.totalorder %s71, %s85
      %p87 = scmp.eq.s32.totalorder %s19, 0
      %p88 = por %p86, %p87
      %s90 = sadd.s32 %s89, 1
      %p93 = scmp.eq.s32.totalorder %s13, 1
      %p94 = scmp.ne.s32.totalorder %s89, %s91
      %p95 = scmp.eq.s32.totalorder %s13, 0
      %p96 = por %p94, %p95
      %p97 = scmp.ne.s32.totalorder %s89, %s91
      %p98 = scmp.eq.s32.totalorder %s18, 1
      %p99 = por %p97, %p98
      %p100 = scmp.ne.s32.totalorder %s91, %s92
      %p101 = scmp.eq.s32.totalorder %s18, 0
      %p102 = por %p100, %p101
      %p103 = scmp.ne.s32.totalorder %s91, %s92
      %p104 = scmp.eq.s32.totalorder %s19, 1
      %p105 = por %p103, %p104
      %p107 = scmp.ne.s32.totalorder %s92, %s106
      %p108 = scmp.eq.s32.totalorder %s19, 0
      %p109 = por %p107, %p108
      %s110 = ssub.s32 %s13, %s20
      %p111 = scmp.eq.s32.totalorder %s110, 0
      %s113 = sadd.s32 %s112, 1
      %s114 = scalar_select %p111, %s112, %s113
      %p117 = pneg %p111
      %p118 = scmp.eq.s32.totalorder %s13, 1
      %p119 = por %p117, %p118
      %p120 = scmp.ne.s32.totalorder %s112, %s115
      %p121 = scmp.eq.s32.totalorder %s13, 0
      %p122 = por %p120, %p121
      %p123 = scmp.ne.s32.totalorder %s112, %s115
      %p124 = scmp.eq.s32.totalorder %s18, 1
      %p125 = por %p123, %p124
      %p126 = scmp.ne.s32.totalorder %s115, %s116
      %p127 = scmp.eq.s32.totalorder %s18, 0
      %p128 = por %p126, %p127
      %p129 = scmp.ne.s32.totalorder %s115, %s116
      %p130 = scmp.eq.s32.totalorder %s19, 1
      %p131 = por %p129, %p130
      %p133 = scmp.ne.s32.totalorder %s116, %s132
      %p134 = scmp.eq.s32.totalorder %s19, 0
      %p135 = por %p133, %p134
      %p136 = scmp.le.s32.totalorder 1, %s13
      %p137 = scmp.lt.s32.totalorder %s13, 3
      %p138 = pnand %p136, %p137
      %p139 = pneg %p138
      // Predicated region
      $region9: #{tpu_custom_call.1} parent=5 // pred_check
        _
      $region10: #{tpu_custom_call.1} parent=5 // pred_check_branch
        %141 = sbr.rel (%p138) target = $region12
      $region11: #{tpu_custom_call.1} parent=5 // pred_region
        %s142 = ssub.s32 %s13, 1
        // Predicated region
        $region13: #{tpu_custom_call.1} parent=11 // pred_check
          %p143 = pneg %p60
        $region14: #{tpu_custom_call.1} parent=11 // pred_check_branch
          %145 = sbr.rel (%p143) target = $region16
        $region15: #{tpu_custom_call.1} parent=11 // pred_region
          _
        $region16: #{tpu_custom_call.1} parent=11 // pred_fallthru
          _
        // Predicated region
        $region17: #{tpu_custom_call.1} parent=11 // pred_check
          %p146 = pneg %p81
        $region18: #{tpu_custom_call.1} parent=11 // pred_check_branch
          %148 = sbr.rel (%p146) target = $region20
        $region19: #{tpu_custom_call.1} parent=11 // pred_region
          _
        $region20: #{tpu_custom_call.1} parent=11 // pred_fallthru
          _
        // Predicated region
        $region21: #{tpu_custom_call.1} parent=11 // pred_check
          %p149 = pneg %p102
        $region22: #{tpu_custom_call.1} parent=11 // pred_check_branch
          %151 = sbr.rel (%p149) target = $region24
        $region23: #{tpu_custom_call.1} parent=11 // pred_region
          _
        $region24: #{tpu_custom_call.1} parent=11 // pred_fallthru
          _
      $region12: #{tpu_custom_call.1} parent=5 // pred_fallthru
        _
      %p152 = scmp.lt.s32.totalorder %s13, 2
      // Predicated region
      $region25: #{tpu_custom_call.1} parent=5 // pred_check
        %p153 = pneg %p152
      $region26: #{tpu_custom_call.1} parent=5 // pred_check_branch
        %155 = sbr.rel (%p153) target = $region28
      $region27: #{tpu_custom_call.1} parent=5 // pred_region
        // Predicated region
        $region29: #{tpu_custom_call.1} parent=27 // pred_check
          %p156 = pneg %p33
        $region30: #{tpu_custom_call.1} parent=27 // pred_check_branch
          %158 = sbr.rel (%p156) target = $region32
        $region31: #{tpu_custom_call.1} parent=27 // pred_region
          %p159 = scmp.lt.s32.totalorder %s13, 1
          %s160 = scalar_select %p159, %s13, 1
          %s161 = smul.addr %s160, 2
          %s162 = smul.addr %s161, 4
          %s163 = scalar_lea.vmem %s0, %s162
        $region32: #{tpu_custom_call.1} parent=27 // pred_fallthru
          _
      $region28: #{tpu_custom_call.1} parent=5 // pred_fallthru
        _
      %p164 = scmp.le.s32.totalorder 1, %s13
      %p165 = scmp.lt.s32.totalorder %s13, 3
      %p166 = pnand %p164, %p165
      %p167 = pneg %p166
      // Predicated region
      $region33: #{tpu_custom_call.1} parent=5 // pred_check
        _
      $region34: #{tpu_custom_call.1} parent=5 // pred_check_branch
        %169 = sbr.rel (%p166) target = $region36
      $region35: #{tpu_custom_call.1} parent=5 // pred_region
        %s170 = ssub.s32 %s13, 1
        %p171 = scmp.lt.s32.totalorder %s18, 1
        %s172 = scalar_select %p171, %s18, 1
        %s173 = smul.addr %s172, 2
        %s174 = smul.addr %s173, 4
        %s175 = scalar_lea.vmem %s0, %s174
        %p176 = pneg %p39
        %p177 = pneg %p36
        %p178 = pneg %p60
        %p179 = pneg %p57
        %p180 = pneg %p81
        %p181 = pneg %p78
        %p182 = pneg %p102
        %p183 = pneg %p99
        %p184 = pneg %p128
        %p185 = pneg %p125
        %s186 = sand.u32 %s115, 1
        %s187 = scalar_lea.sflag [#allocation3], %s186
        %s188 = sand.u32 %s115, 1
        %s189 = smul.addr %s188, 8
        %s190 = scalar_lea.vmem [#allocation2], %s189
        %p191 = scmp.lt.s32.totalorder %s18, 1
        %s192 = scalar_select %p191, %s18, 1
        %s193 = smul.addr %s192, 2
        %s194 = smul.addr %s193, 4
        %s195 = scalar_lea.vmem %s0, %s194
        %v196 = vld [vmem:[%s195] sm:$0xff]
        %v197 = vld [vmem:[%s3] sm:$0xff]
        %v198 = vld [vmem:[%s3 + $0x8] sm:$0xff]
        %v199 = vld [vmem:[%s3 + $0x10] sm:$0x1]
        %v200 = vld [vmem:[%s3 + $0x18] sm:$0x1]
        %v201 = vld [vmem:[%s1] sm:$0xff]
        %v202 = vld [vmem:[%s1 + $0x8] sm:$0xff]
        %v203 = vld [vmem:[%s1 + $0x10] sm:$0xff]
        %v204 = vld [vmem:[%s1 + $0x18] sm:$0xff]
        %v205 = vld [vmem:[%s1 + $0x20] sm:$0xf]
        %v207 = vcombine.high %v196, %v196
        %vm208 = vcmask 31744
        %v210 = vsel %vm208, %v201, 0
        %v213 = vsel %vm208, %v202, 0
        %v216 = vsel %vm208, %v203, 0
        %v219 = vsel %vm208, %v204, 0
        %v222 = vsel %vm208, %v205, 0
        %vm224 = vcmask 1043456
        %v225 = vsel %vm224, %v196, 0
        %v227 = vsel %vm224, %v207, 0
        %229 = vmatprep.subr.mxu0 %v227
        %230 = vmatpush1.msra.mxu0 %v225
        %231 = vmatprep.subr.mxu0 0.0
        %232 = vmatpush1.msra.mxu0 0.0
        %233 = vmatprep.subr.mxu0 0.0
        %234 = vmatpush1.msra.mxu0 0.0
        %235 = vmatprep.subr.mxu0 0.0
        %236 = vmatpush1.msra.mxu0 0.0
        %237 = vmatprep.subr.mxu0 0.0
        %238 = vmatpush1.msra.mxu0 0.0
        %239 = vmatprep.subr.mxu0 0.0
        %240 = vmatpush1.msra.mxu0 0.0
        %241 = vmatprep.subr.mxu0 0.0
        %242 = vmatpush1.msra.mxu0 0.0
        %243 = vmatprep.subr.mxu0 0.0
        %244 = vmatpush1.msra.mxu0 0.0
        %245 = vmatprep.subr.mxu0 0.0
        %246 = vmatpush1.msra.mxu0 0.0
        %247 = vmatprep.subr.mxu0 0.0
        %248 = vmatpush1.msra.mxu0 0.0
        %249 = vmatprep.subr.mxu0 0.0
        %250 = vmatpush1.msra.mxu0 0.0
        %251 = vmatprep.subr.mxu0 0.0
        %252 = vmatpush1.msra.mxu0 0.0
        %253 = vmatprep.subr.mxu0 0.0
        %254 = vmatpush1.msra.mxu0 0.0
        %255 = vmatprep.subr.mxu0 0.0
        %256 = vmatpush1.msra.mxu0 0.0
        %257 = vmatprep.subr.mxu0 0.0
        %258 = vmatpush1.msra.mxu0 0.0
        %259 = vmatprep.subr.mxu0 0.0
        %260 = vmatpush1.msra.mxu0 0.0
        %261 = vmatprep.subr.mxu0 0.0
        %262 = vmatpush1.msra.mxu0 0.0
        %263 = vmatprep.subr.mxu0 0.0
        %264 = vmatpush1.msra.mxu0 0.0
        %265 = vmatprep.subr.mxu0 0.0
        %266 = vmatpush1.msra.mxu0 0.0
        %267 = vmatprep.subr.mxu0 0.0
        %268 = vmatpush1.msra.mxu0 0.0
        %269 = vmatprep.subr.mxu0 0.0
        %270 = vmatpush1.msra.mxu0 0.0
        %271 = vmatprep.subr.mxu0 0.0
        %272 = vmatpush1.msra.mxu0 0.0
        %273 = vmatprep.subr.mxu0 0.0
        %274 = vmatpush1.msra.mxu0 0.0
        %275 = vmatprep.subr.mxu0 0.0
        %276 = vmatpush1.msra.mxu0 0.0
        %277 = vmatprep.subr.mxu0 0.0
        %278 = vmatpush1.msra.mxu0 0.0
        %279 = vmatprep.subr.mxu0 0.0
        %280 = vmatpush1.msra.mxu0 0.0
        %281 = vmatprep.subr.mxu0 0.0
        %282 = vmatpush1.msra.mxu0 0.0
        %283 = vmatprep.subr.mxu0 0.0
        %284 = vmatpush1.msra.mxu0 0.0
        %285 = vmatprep.subr.mxu0 0.0
        %286 = vmatpush1.msra.mxu0 0.0
        %287 = vmatprep.subr.mxu0 0.0
        %288 = vmatpush1.msra.mxu0 0.0
        %289 = vmatprep.subr.mxu0 0.0
        %290 = vmatpush1.msra.mxu0 0.0
        %291 = vmatprep.subr.mxu0 0.0
        %292 = vmatpush1.msra.mxu0 0.0
        %293 = vmatprep.mubr.f32.mxu0 0.0
        %294 = vmatmul.mubr.f32.gmra.mrb[0].mxu0 %v210
        %v295 = vpop.f32.mrb[0].mxu0
        %v296 = vadd.f32 0.0, %v295
        %v297 = vpop.f32.mrb[0].mxu0
        %v298 = vadd.f32 0.0, %v297
        %299 = vmatprep.mubr.f32.mxu0 0.0
        %300 = vmatmul.mubr.f32.gmra.mrb[0].mxu0 %v213
        %v301 = vpop.f32.mrb[0].mxu0
        %v302 = vadd.f32 0.0, %v301
        %v303 = vpop.f32.mrb[0].mxu0
        %v304 = vadd.f32 0.0, %v303
        %305 = vmatprep.mubr.f32.mxu0 0.0
        %306 = vmatmul.mubr.f32.gmra.mrb[0].mxu0 %v216
        %v307 = vpop.f32.mrb[0].mxu0
        %v308 = vadd.f32 0.0, %v307
        %v309 = vpop.f32.mrb[0].mxu0
        %v310 = vadd.f32 0.0, %v309
        %311 = vmatprep.mubr.f32.mxu0 0.0
        %312 = vmatmul.mubr.f32.gmra.mrb[0].mxu0 %v219
        %v313 = vpop.f32.mrb[0].mxu0
        %v314 = vadd.f32 0.0, %v313
        %v315 = vpop.f32.mrb[0].mxu0
        %v316 = vadd.f32 0.0, %v315
        %317 = vmatprep.mubr.f32.mxu0 0.0
        %318 = vmatmul.mubr.f32.gmra.mrb[0].mxu0 %v222
        %v319 = vpop.f32.mrb[0].mxu0
        %v320 = vadd.f32 0.0, %v319
        %v321 = vpop.f32.mrb[0].mxu0
        %v322 = vadd.f32 0.0, %v321
        %323 = vdwg.mxu0
        %324 = vrot.lane.b32.xlu0 %v296, 17
        %v325 = vpop.permute.xlu0 %324
        %326 = vrot.lane.b32.xlu0 %v298, 17
        %v327 = vpop.permute.xlu0 %326
        %v328 = vlaneseq
        %v329 = vand.u32 %v328, 127
        %vm330 = vcmp.lt.s32.totalorder %v329, 17
        %v331 = vsel %vm330, %v325, %v327
        %v332 = vsel %vm330, %v327, %v325
        %v333 = vlaneseq
        %v334 = vshrl.u32 %v333, 7
        %v335 = vsub.s32 0, %v334
        %v336 = vrot.slane %v197, %v335
        %v337 = vlaneseq
        %v338 = vshrl.u32 %v337, 7
        %v339 = vsub.s32 0, %v338
        %v340 = vrot.slane %v198, %v339
        %v341 = vmul.f32 %v332, %v336
        %v342 = vmul.f32 %v331, %v340
        %v343 = vadd.f32 %v341, 0.0
        %v344 = vadd.f32 %v342, 0.0
        %v347 = vrot.slane %v296, 4
        %v348 = vrot.slane %v298, 4
        %351 = vrot.lane.b32.xlu0 %v347, 16
        %v352 = vpop.permute.xlu0 %351
        %353 = vrot.lane.b32.xlu0 %v348, 16
        %v354 = vpop.permute.xlu0 %353
        %vm355 = vcmp.lt.s32.totalorder %v329, 16
        %v356 = vsel %vm355, %v352, %v354
        %v357 = vsel %vm355, %v354, %v352
        %v358 = vlaneseq
        %v359 = vshrl.u32 %v358, 7
        %v360 = vsub.s32 1, %v359
        %v361 = vrot.slane %v197, %v360
        %v362 = vlaneseq
        %v363 = vshrl.u32 %v362, 7
        %v364 = vsub.s32 1, %v363
        %v365 = vrot.slane %v198, %v364
        %v366 = vmul.f32 %v357, %v361
        %v367 = vmul.f32 %v356, %v365
        %v368 = vadd.f32 %v343, %v366
        %v369 = vadd.f32 %v344, %v367
        %370 = vrot.lane.b32.xlu0 %v302, 15
        %v371 = vpop.permute.xlu0 %370
        %372 = vrot.lane.b32.xlu0 %v304, 15
        %v373 = vpop.permute.xlu0 %372
        %vm374 = vcmp.lt.s32.totalorder %v329, 15
        %v375 = vsel %vm374, %v371, %v373
        %v376 = vsel %vm374, %v373, %v371
        %v377 = vlaneseq
        %v378 = vshrl.u32 %v377, 7
        %v379 = vsub.s32 2, %v378
        %v380 = vrot.slane %v197, %v379
        %v381 = vlaneseq
        %v382 = vshrl.u32 %v381, 7
        %v383 = vsub.s32 2, %v382
        %v384 = vrot.slane %v198, %v383
        %v385 = vmul.f32 %v376, %v380
        %v386 = vmul.f32 %v375, %v384
        %v387 = vadd.f32 %v368, %v385
        %v388 = vadd.f32 %v369, %v386
        %v391 = vrot.slane %v302, 4
        %v392 = vrot.slane %v304, 4
        %395 = vrot.lane.b32.xlu0 %v391, 1
        %v396 = vpop.permute.xlu0 %395
        %397 = vrot.lane.b32.xlu0 %v392, 1
        %v398 = vpop.permute.xlu0 %397
        %vm399 = vcmp.lt.s32.totalorder %v329, 1
        %v400 = vsel %vm399, %v396, %v398
        %v401 = vsel %vm399, %v398, %v396
        %v402 = vlaneseq
        %v403 = vshrl.u32 %v402, 7
        %v404 = vsub.s32 3, %v403
        %v405 = vrot.slane %v197, %v404
        %v406 = vlaneseq
        %v407 = vshrl.u32 %v406, 7
        %v408 = vsub.s32 3, %v407
        %v409 = vrot.slane %v198, %v408
        %v410 = vmul.f32 %v401, %v405
        %v411 = vmul.f32 %v400, %v409
        %v412 = vadd.f32 %v387, %v410
        %v413 = vadd.f32 %v388, %v411
        %v414 = vadd.f32 %v412, %v308
        %v415 = vadd.f32 %v413, %v310
        %v418 = vrot.slane %v308, 4
        %v419 = vrot.slane %v310, 4
        %422 = vrot.lane.b32.xlu0 %v418, 127
        %v423 = vpop.permute.xlu0 %422
        %424 = vrot.lane.b32.xlu0 %v419, 127
        %v425 = vpop.permute.xlu0 %424
        %vm426 = vcmp.lt.s32.totalorder %v329, 127
        %v427 = vsel %vm426, %v423, %v425
        %v428 = vsel %vm426, %v425, %v423
        %v429 = vlaneseq
        %v430 = vshrl.u32 %v429, 7
        %v431 = vsub.s32 5, %v430
        %v432 = vrot.slane %v197, %v431
        %v433 = vlaneseq
        %v434 = vshrl.u32 %v433, 7
        %v435 = vsub.s32 5, %v434
        %v436 = vrot.slane %v198, %v435
        %v437 = vmul.f32 %v427, %v432
        %v438 = vmul.f32 %v428, %v436
        %v439 = vadd.f32 %v414, %v437
        %v440 = vadd.f32 %v415, %v438
        %441 = vrot.lane.b32.xlu0 %v314, 113
        %v442 = vpop.permute.xlu0 %441
        %443 = vrot.lane.b32.xlu0 %v316, 113
        %v444 = vpop.permute.xlu0 %443
        %vm445 = vcmp.lt.s32.totalorder %v329, 113
        %v446 = vsel %vm445, %v442, %v444
        %v447 = vsel %vm445, %v444, %v442
        %v448 = vlaneseq
        %v449 = vshrl.u32 %v448, 7
        %v450 = vsub.s32 6, %v449
        %v451 = vrot.slane %v197, %v450
        %v452 = vlaneseq
        %v453 = vshrl.u32 %v452, 7
        %v454 = vsub.s32 6, %v453
        %v455 = vrot.slane %v198, %v454
        %v456 = vmul.f32 %v446, %v451
        %v457 = vmul.f32 %v447, %v455
        %v458 = vadd.f32 %v439, %v456
        %v459 = vadd.f32 %v440, %v457
        %v462 = vrot.slane %v314, 4
        %v463 = vrot.slane %v316, 4
        %466 = vrot.lane.b32.xlu0 %v462, 112
        %v467 = vpop.permute.xlu0 %466
        %468 = vrot.lane.b32.xlu0 %v463, 112
        %v469 = vpop.permute.xlu0 %468
        %vm470 = vcmp.lt.s32.totalorder %v329, 112
        %v471 = vsel %vm470, %v467, %v469
        %v472 = vsel %vm470, %v469, %v467
        %v473 = vlaneseq
        %v474 = vshrl.u32 %v473, 7
        %v475 = vsub.s32 7, %v474
        %v476 = vrot.slane %v197, %v475
        %v477 = vlaneseq
        %v478 = vshrl.u32 %v477, 7
        %v479 = vsub.s32 7, %v478
        %v480 = vrot.slane %v198, %v479
        %v481 = vmul.f32 %v471, %v476
        %v482 = vmul.f32 %v472, %v480
        %v483 = vadd.f32 %v458, %v481
        %v484 = vadd.f32 %v459, %v482
        %485 = vrot.lane.b32.xlu0 %v320, 111
        %v486 = vpop.permute.xlu0 %485
        %487 = vrot.lane.b32.xlu0 %v322, 111
        %v488 = vpop.permute.xlu0 %487
        %vm489 = vcmp.lt.s32.totalorder %v329, 111
        %v490 = vsel %vm489, %v486, %v488
        %v491 = vsel %vm489, %v488, %v486
        %v492 = vlaneseq
        %v493 = vshrl.u32 %v492, 7
        %v494 = vsub.s32 0, %v493
        %v495 = vrot.slane %v199, %v494
        %v496 = vlaneseq
        %v497 = vshrl.u32 %v496, 7
        %v498 = vsub.s32 0, %v497
        %v499 = vrot.slane %v200, %v498
        %v500 = vmul.f32 %v490, %v495
        %v501 = vmul.f32 %v491, %v499
        %v502 = vadd.f32 %v483, %v500
        %v503 = vadd.f32 %v484, %v501
        %v504 = vsel %vm224, %v502, 0.0
        %v505 = vsel %vm224, %v503, 0.0
        %v506 = vadd.f32 %v504, %v505
        %507 = vadd.xlane.f32.xlu0 %v506
        %v508 = vpop.xlane.xlu0 %507
        %v509 = vrcp.pop 256.0
        %v510 = vmul.f32 %v508, %v509
        %v511 = vsub.f32 %v502, %v510
        %v512 = vsub.f32 %v503, %v510
        %v513 = vmul.f32 %v511, %v511
        %v514 = vmul.f32 %v512, %v512
        %v515 = vsel %vm224, %v513, 0.0
        %v516 = vsel %vm224, %v514, 0.0
        %v517 = vadd.f32 %v515, %v516
        %518 = vadd.xlane.f32.xlu0 %v517
        %v519 = vpop.xlane.xlu0 %518
        %v520 = vmul.f32 %v519, %v509
        %v521 = vadd.f32 %v520, 1e-05
        %v522 = vrsqrt.pop %v521
        %v523 = vmul.f32 %v511, %v522
        %v524 = vmul.f32 %v512, %v522
        %v525 = vmax.f32 %v523, 0.0
        %v526 = vmax.f32 %v524, 0.0
        %v527 = vld [vmem:[%s2] sm:$0xff]
        %v528 = vld [vmem:[%s2 + $0x8] sm:$0xff]
        %v529 = vld [vmem:[%s2 + $0x10] sm:$0xff]
        %v530 = vld [vmem:[%s2 + $0x18] sm:$0xff]
        %v531 = vld [vmem:[%s2 + $0x20] sm:$0xf]
        %v533 = vsel %vm208, %v527, 0
        %v536 = vsel %vm208, %v528, 0
        %v539 = vsel %vm208, %v529, 0
        %v542 = vsel %vm208, %v530, 0
        %v545 = vsel %vm208, %v531, 0
        %v548 = vsel %vm224, %v525, 0
        %v551 = vsel %vm224, %v526, 0
        %553 = vmatprep.subr.mxu0 %v551
        %554 = vmatpush1.msra.mxu0 %v548
        %555 = vmatprep.subr.mxu0 0.0
        %556 = vmatpush1.msra.mxu0 0.0
        %557 = vmatprep.subr.mxu0 0.0
        %558 = vmatpush1.msra.mxu0 0.0
        %559 = vmatprep.subr.mxu0 0.0
        %560 = vmatpush1.msra.mxu0 0.0
        %561 = vmatprep.subr.mxu0 0.0
        %562 = vmatpush1.msra.mxu0 0.0
        %563 = vmatprep.subr.mxu0 0.0
        %564 = vmatpush1.msra.mxu0 0.0
        %565 = vmatprep.subr.mxu0 0.0
        %566 = vmatpush1.msra.mxu0 0.0
        %567 = vmatprep.subr.mxu0 0.0
        %568 = vmatpush1.msra.mxu0 0.0
        %569 = vmatprep.subr.mxu0 0.0
        %570 = vmatpush1.msra.mxu0 0.0
        %571 = vmatprep.subr.mxu0 0.0
        %572 = vmatpush1.msra.mxu0 0.0
        %573 = vmatprep.subr.mxu0 0.0
        %574 = vmatpush1.msra.mxu0 0.0
        %575 = vmatprep.subr.mxu0 0.0
        %576 = vmatpush1.msra.mxu0 0.0
        %577 = vmatprep.subr.mxu0 0.0
        %578 = vmatpush1.msra.mxu0 0.0
        %579 = vmatprep.subr.mxu0 0.0
        %580 = vmatpush1.msra.mxu0 0.0
        %581 = vmatprep.subr.mxu0 0.0
        %582 = vmatpush1.msra.mxu0 0.0
        %583 = vmatprep.subr.mxu0 0.0
        %584 = vmatpush1.msra.mxu0 0.0
        %585 = vmatprep.subr.mxu0 0.0
        %586 = vmatpush1.msra.mxu0 0.0
        %587 = vmatprep.subr.mxu0 0.0
        %588 = vmatpush1.msra.mxu0 0.0
        %589 = vmatprep.subr.mxu0 0.0
        %590 = vmatpush1.msra.mxu0 0.0
        %591 = vmatprep.subr.mxu0 0.0
        %592 = vmatpush1.msra.mxu0 0.0
        %593 = vmatprep.subr.mxu0 0.0
        %594 = vmatpush1.msra.mxu0 0.0
        %595 = vmatprep.subr.mxu0 0.0
        %596 = vmatpush1.msra.mxu0 0.0
        %597 = vmatprep.subr.mxu0 0.0
        %598 = vmatpush1.msra.mxu0 0.0
        %599 = vmatprep.subr.mxu0 0.0
        %600 = vmatpush1.msra.mxu0 0.0
        %601 = vmatprep.subr.mxu0 0.0
        %602 = vmatpush1.msra.mxu0 0.0
        %603 = vmatprep.subr.mxu0 0.0
        %604 = vmatpush1.msra.mxu0 0.0
        %605 = vmatprep.subr.mxu0 0.0
        %606 = vmatpush1.msra.mxu0 0.0
        %607 = vmatprep.subr.mxu0 0.0
        %608 = vmatpush1.msra.mxu0 0.0
        %609 = vmatprep.subr.mxu0 0.0
        %610 = vmatpush1.msra.mxu0 0.0
        %611 = vmatprep.subr.mxu0 0.0
        %612 = vmatpush1.msra.mxu0 0.0
        %613 = vmatprep.subr.mxu0 0.0
        %614 = vmatpush1.msra.mxu0 0.0
        %615 = vmatprep.subr.mxu0 0.0
        %616 = vmatpush1.msra.mxu0 0.0
        %617 = vmatprep.mubr.f32.mxu0 0.0
        %618 = vmatmul.mubr.f32.gmra.mrb[0].mxu0 %v533
        %v619 = vpop.f32.mrb[0].mxu0
        %v620 = vadd.f32 0.0, %v619
        %v621 = vpop.f32.mrb[0].mxu0
        %v622 = vadd.f32 0.0, %v621
        %623 = vmatprep.mubr.f32.mxu0 0.0
        %624 = vmatmul.mubr.f32.gmra.mrb[0].mxu0 %v536
        %v625 = vpop.f32.mrb[0].mxu0
        %v626 = vadd.f32 0.0, %v625
        %v627 = vpop.f32.mrb[0].mxu0
        %v628 = vadd.f32 0.0, %v627
        %629 = vmatprep.mubr.f32.mxu0 0.0
        %630 = vmatmul.mubr.f32.gmra.mrb[0].mxu0 %v539
        %v631 = vpop.f32.mrb[0].mxu0
        %v632 = vadd.f32 0.0, %v631
        %v633 = vpop.f32.mrb[0].mxu0
        %v634 = vadd.f32 0.0, %v633
        %635 = vmatprep.mubr.f32.mxu0 0.0
        %636 = vmatmul.mubr.f32.gmra.mrb[0].mxu0 %v542
        %v637 = vpop.f32.mrb[0].mxu0
        %v638 = vadd.f32 0.0, %v637
        %v639 = vpop.f32.mrb[0].mxu0
        %v640 = vadd.f32 0.0, %v639
        %641 = vmatprep.mubr.f32.mxu0 0.0
        %642 = vmatmul.mubr.f32.gmra.mrb[0].mxu0 %v545
        %v643 = vpop.f32.mrb[0].mxu0
        %v644 = vadd.f32 0.0, %v643
        %v645 = vpop.f32.mrb[0].mxu0
        %v646 = vadd.f32 0.0, %v645
        %647 = vdwg.mxu0
        %648 = vrot.lane.b32.xlu0 %v620, 17
        %v649 = vpop.permute.xlu0 %648
        %650 = vrot.lane.b32.xlu0 %v622, 17
        %v651 = vpop.permute.xlu0 %650
        %v652 = vsel %vm330, %v649, %v651
        %v653 = vsel %vm330, %v651, %v649
        %v654 = vmul.f32 %v653, %v336
        %v655 = vmul.f32 %v652, %v340
        %v656 = vadd.f32 %v654, 0.0
        %v657 = vadd.f32 %v655, 0.0
        %v660 = vrot.slane %v620, 4
        %v661 = vrot.slane %v622, 4
        %664 = vrot.lane.b32.xlu0 %v660, 16
        %v665 = vpop.permute.xlu0 %664
        %666 = vrot.lane.b32.xlu0 %v661, 16
        %v667 = vpop.permute.xlu0 %666
        %v668 = vsel %vm355, %v665, %v667
        %v669 = vsel %vm355, %v667, %v665
        %v670 = vmul.f32 %v669, %v361
        %v671 = vmul.f32 %v668, %v365
        %v672 = vadd.f32 %v656, %v670
        %v673 = vadd.f32 %v657, %v671
        %674 = vrot.lane.b32.xlu0 %v626, 15
        %v675 = vpop.permute.xlu0 %674
        %676 = vrot.lane.b32.xlu0 %v628, 15
        %v677 = vpop.permute.xlu0 %676
        %v678 = vsel %vm374, %v675, %v677
        %v679 = vsel %vm374, %v677, %v675
        %v680 = vmul.f32 %v679, %v380
        %v681 = vmul.f32 %v678, %v384
        %v682 = vadd.f32 %v672, %v680
        %v683 = vadd.f32 %v673, %v681
        %v686 = vrot.slane %v626, 4
        %v687 = vrot.slane %v628, 4
        %690 = vrot.lane.b32.xlu0 %v686, 1
        %v691 = vpop.permute.xlu0 %690
        %692 = vrot.lane.b32.xlu0 %v687, 1
        %v693 = vpop.permute.xlu0 %692
        %v694 = vsel %vm399, %v691, %v693
        %v695 = vsel %vm399, %v693, %v691
        %v696 = vmul.f32 %v695, %v405
        %v697 = vmul.f32 %v694, %v409
        %v698 = vadd.f32 %v682, %v696
        %v699 = vadd.f32 %v683, %v697
        %v700 = vadd.f32 %v698, %v632
        %v701 = vadd.f32 %v699, %v634
        %v704 = vrot.slane %v632, 4
        %v705 = vrot.slane %v634, 4
        %708 = vrot.lane.b32.xlu0 %v704, 127
        %v709 = vpop.permute.xlu0 %708
        %710 = vrot.lane.b32.xlu0 %v705, 127
        %v711 = vpop.permute.xlu0 %710
        %v712 = vsel %vm426, %v709, %v711
        %v713 = vsel %vm426, %v711, %v709
        %v714 = vmul.f32 %v712, %v432
        %v715 = vmul.f32 %v713, %v436
        %v716 = vadd.f32 %v700, %v714
        %v717 = vadd.f32 %v701, %v715
        %718 = vrot.lane.b32.xlu0 %v638, 113
        %v719 = vpop.permute.xlu0 %718
        %720 = vrot.lane.b32.xlu0 %v640, 113
        %v721 = vpop.permute.xlu0 %720
        %v722 = vsel %vm445, %v719, %v721
        %v723 = vsel %vm445, %v721, %v719
        %v724 = vmul.f32 %v722, %v451
        %v725 = vmul.f32 %v723, %v455
        %v726 = vadd.f32 %v716, %v724
        %v727 = vadd.f32 %v717, %v725
        %v730 = vrot.slane %v638, 4
        %v731 = vrot.slane %v640, 4
        %734 = vrot.lane.b32.xlu0 %v730, 112
        %v735 = vpop.permute.xlu0 %734
        %736 = vrot.lane.b32.xlu0 %v731, 112
        %v737 = vpop.permute.xlu0 %736
        %v738 = vsel %vm470, %v735, %v737
        %v739 = vsel %vm470, %v737, %v735
        %v740 = vmul.f32 %v738, %v476
        %v741 = vmul.f32 %v739, %v480
        %v742 = vadd.f32 %v726, %v740
        %v743 = vadd.f32 %v727, %v741
        %744 = vrot.lane.b32.xlu0 %v644, 111
        %v745 = vpop.permute.xlu0 %744
        %746 = vrot.lane.b32.xlu0 %v646, 111
        %v747 = vpop.permute.xlu0 %746
        %v748 = vsel %vm489, %v745, %v747
        %v749 = vsel %vm489, %v747, %v745
        %v750 = vmul.f32 %v748, %v495
        %v751 = vmul.f32 %v749, %v499
        %v752 = vadd.f32 %v742, %v750
        %v753 = vadd.f32 %v743, %v751
        %v754 = vsel %vm224, %v752, 0.0
        %v755 = vsel %vm224, %v753, 0.0
        %v756 = vadd.f32 %v754, %v755
        %757 = vadd.xlane.f32.xlu0 %v756
        %v758 = vpop.xlane.xlu0 %757
        %v759 = vmul.f32 %v758, %v509
        %v760 = vsub.f32 %v752, %v759
        %v761 = vsub.f32 %v753, %v759
        %v762 = vmul.f32 %v760, %v760
        %v763 = vmul.f32 %v761, %v761
        %v764 = vsel %vm224, %v762, 0.0
        %v765 = vsel %vm224, %v763, 0.0
        %v766 = vadd.f32 %v764, %v765
        %767 = vadd.xlane.f32.xlu0 %v766
        %v768 = vpop.xlane.xlu0 %767
        %v769 = vmul.f32 %v768, %v509
        %v770 = vadd.f32 %v769, 1e-05
        %v771 = vrsqrt.pop %v770
        %v772 = vmul.f32 %v760, %v771
        %v773 = vmul.f32 %v761, %v771
        %v775 = vadd.f32 %v772, %v196
        %v776 = vadd.f32 %v773, %v207
        %v777 = vmax.f32 %v775, 0.0
        %v778 = vmax.f32 %v776, 0.0
        %v781 = vcombine.low %v777, %v778
        %783 = vst [vmem:[%s190] sm:$0xff] %v781
        %s784 = sand.u32 %s115, 1
        %s785 = scalar_lea.sflag [#allocation3], %s784
        %s786 = sand.u32 %s115, 1
        %s787 = smul.addr %s786, 8
        %s788 = scalar_lea.vmem [#allocation2], %s787
        // Predicated region
        $region37: #{tpu_custom_call.1} parent=35 // pred_check
          %p789 = pneg %p125
        $region38: #{tpu_custom_call.1} parent=35 // pred_check_branch
          %791 = sbr.rel (%p789) target = $region40
        $region39: #{tpu_custom_call.1} parent=35 // pred_region
          %s793 = ssub.s32 128, 128
          %794 = vsyncadd %s785, %s793
          %s795 = smul.addr %s18, 2
          %s796 = smul.addr %s795, 64
          %s797 = scalar_lea.hbm %s4, %s796
          %s799 = sshll.u32 %s788, 4
          %s800 = int_to_ptr.vmem [resolvable:$true] %s799
          %802 = dma.vmem_to_hbm [thread:$0]  %s800, 128, %s797, %s785
        $region40: #{tpu_custom_call.1} parent=35 // pred_fallthru
          _
      $region36: #{tpu_custom_call.1} parent=5 // pred_fallthru
        _
      %p803 = scmp.le.s32.totalorder 2, %s13
      // Predicated region
      $region41: #{tpu_custom_call.1} parent=5 // pred_check
        %p804 = pneg %p803
      $region42: #{tpu_custom_call.1} parent=5 // pred_check_branch
        %806 = sbr.rel (%p804) target = $region44
      $region43: #{tpu_custom_call.1} parent=5 // pred_region
        %s807 = ssub.s32 %s13, 2
        // Predicated region
        $region45: #{tpu_custom_call.1} parent=43 // pred_check
          %p808 = pneg %p131
        $region46: #{tpu_custom_call.1} parent=43 // pred_check_branch
          %810 = sbr.rel (%p808) target = $region48
        $region47: #{tpu_custom_call.1} parent=43 // pred_region
          %s811 = sand.u32 %s116, 1
          %s812 = scalar_lea.sflag [#allocation3], %s811
          %s813 = sand.u32 %s116, 1
          %s814 = smul.addr %s813, 8
          %s815 = scalar_lea.vmem [#allocation2], %s814
          %816 = dma.done %s812, 128
        $region48: #{tpu_custom_call.1} parent=43 // pred_fallthru
          _
      $region44: #{tpu_custom_call.1} parent=5 // pred_fallthru
        _
    $region6: #{tpu_custom_call.1} parent=1 // loop_footer
      %s17 = sadd.s32 1, %s13
    $region7: #{tpu_custom_call.1} parent=1 // loop_footer_branch
      %12 = sbr.rel target = $region3
    $region8: #{tpu_custom_call.1} parent=1 // loop_exit
      _
    %817 = vsyncpa [#allocation3], 1
    %s818 = scalar_lea.sflag [#allocation3], 1
    %819 = vsyncpa %s818, 1

</llo_original>
